<compile_context>
chip_gen: v7x
topology: tpu7x:2x2x1
jax: 0.10.0
libtpu: 0.0.40
codegen_flags: <defaults>
</compile_context>

<pallas_src>
import numpy as np
import jax
import jax.numpy as jnp
from jax.experimental import pallas as pl
from jax.experimental.pallas import tpu as pltpu

# ---- module hyper-parameters (FreqChunker.__init__) -------------------------
ALPHA = 1.0
LOG_THRESHOLD = -10.0          # must be negative
RANK_FIRST = 1996

# TODO(synk): `log_zipf_law` is not defined in the provided snippet; we use the
# standard Zipf self-information  log p(rank) ~= -alpha * log(rank)  with
# rank = max(token_id - rank_first, 1), matching the call signature
# log_zipf_law(token_ids, rank_first=1996) and yielding negative values.


def _freq_chunker_kernel(tid_ref, keep_ref, tri_ref, logp_ref, sums_ref,
                         carry_ref):
    """One (block_b, block_l) tile of the (B, L) problem.

    Grid = (batch blocks [parallel], L blocks [arbitrary, scanned in order]).
    carry_ref (block_b, 1) holds the running cumulative sum up to the end of
    the previous L block for each row.
    """
    l = pl.program_id(1)

    @pl.when(l == 0)
    def _():
        carry_ref[...] = jnp.zeros_like(carry_ref)

    tid = tid_ref[...].astype(jnp.float32)
    keep = keep_ref[...].astype(jnp.float32)        # int8 -> f32 in-kernel

    # --- elementwise Zipf self-information, masked (VPU + EUP log) -----------
    rank = jnp.maximum(tid - jnp.float32(RANK_FIRST), 1.0)
    logp = (-jnp.float32(ALPHA)) * jnp.log(rank) * keep
    logp_ref[...] = logp

    # --- per-block inclusive cumsum via constant upper-tri ones matmul (MXU),
    #     then add the running carry from the previous blocks -----------------
    local = jnp.dot(logp, tri_ref[...], preferred_element_type=jnp.float32)
    sums = local + carry_ref[...]                   # (block_b, 1) broadcasts
    sums_ref[...] = sums
    carry_ref[...] = sums[:, -1:]                   # new running total


def freq_chunker_pallas(token_ids, keep_mask_u8, *, block_b=8, block_l=512):
    """token_ids: (B, L) int32, keep_mask_u8: (B, L) uint8/int8.

    Returns (token_log_likelihoods, cumsum) as (B, L) float32 arrays.
    """
    B, L = token_ids.shape

    # Lane-dense tiling: block_l multiple of 128, L padded to multiple of it.
    L_pad128 = pl.cdiv(L, 128) * 128
    block_l = min(block_l, L_pad128)
    L_pad = pl.cdiv(L_pad128, block_l) * block_l
    # Sublane-dense batch: pad B to a multiple of block_b (>= 8).
    B_pad = pl.cdiv(B, block_b) * block_b

    tid_p = jnp.zeros((B_pad, L_pad), jnp.int32).at[:B, :L].set(
        token_ids.astype(jnp.int32))
    keep_p = jnp.zeros((B_pad, L_pad), jnp.int8).at[:B, :L].set(
        keep_mask_u8.astype(jnp.int8))

    # Constant upper-triangular ones matrix: cumsum(x) == x @ T, T[i,j]=1 iff i<=j.
    idx = np.arange(block_l)
    tri = jnp.asarray((idx[:, None] <= idx[None, :]).astype(np.float32))

    grid = (B_pad // block_b, L_pad // block_l)
    data_spec = pl.BlockSpec((block_b, block_l), lambda b, l: (b, l))
    tri_spec = pl.BlockSpec((block_l, block_l), lambda b, l: (0, 0))  # resident

    out_shapes = (
        jax.ShapeDtypeStruct((B_pad, L_pad), jnp.float32),   # log-likelihoods
        jax.ShapeDtypeStruct((B_pad, L_pad), jnp.float32),   # cumulative sums
    )

    logp, sums = pl.pallas_call(
        _freq_chunker_kernel,
        out_shape=out_shapes,
        grid_spec=pltpu.PrefetchScalarGridSpec(
            num_scalar_prefetch=0,
            grid=grid,
            in_specs=[data_spec, data_spec, tri_spec],
            out_specs=(data_spec, data_spec),
            scratch_shapes=[pltpu.VMEM((block_b, 1), jnp.float32)],
        ),
        compiler_params=pltpu.CompilerParams(
            dimension_semantics=("parallel", "arbitrary"),
            vmem_limit_bytes=32 * 1024 * 1024,
        ),
    )(tid_p, keep_p, tri)

    return logp[:B, :L], sums[:B, :L]


def freq_chunker_forward(inp, masks_dict, token_ids, mask_special_tokens=True):
    """Reproduces FreqChunker.forward. Returns (indices_to_compact, logp, sums)."""
    batch_size = inp.shape[0]
    if not mask_special_tokens:
        keep_mask = (np.asarray(masks_dict["padding_mask"]) == 1)
    else:
        keep_mask = (np.asarray(masks_dict["regular_tokens_mask"]) == 1)

    keep_u8 = jnp.asarray(keep_mask.astype(np.uint8))
    tids = jnp.asarray(np.asarray(token_ids).astype(np.int32))

    logp, sums = freq_chunker_pallas(tids, keep_u8)
    logp = np.asarray(jax.block_until_ready(logp))
    sums = np.asarray(jax.block_until_ready(sums))

    # --- host-side bracket construction (data-dependent, sequential) ---------
    # TODO(synk): variable-length list-of-tuples output with a data-dependent
    # while-loop has no Pallas/array equivalent; kept on host, as in the module.
    indices_to_compact = []
    for b in range(batch_size):
        m = keep_mask[b, :]
        Lm = len(m)
        idx_left, idx_right, idxs_b = 0, 0, []
        while idx_right < Lm:
            if m[idx_left] == 0:
                idx_right = idx_left + 1
            else:
                bo = (sums[b, :] - sums[b, idx_left]) < LOG_THRESHOLD
                combined = np.logical_or(bo, ~m)
                hits = np.nonzero(combined[idx_left:])[0]
                if hits.size == 0:
                    idx_right = Lm
                else:
                    idx_right = int(hits[0]) + idx_left
            idxs_b.append(tuple(range(idx_left, idx_right)))
            idx_left = idx_right
        indices_to_compact.append(idxs_b)
    return indices_to_compact, logp, sums


if __name__ == "__main__":
    key = jax.random.PRNGKey(0)
    B, L, E = 2, 16, 32

    k1, k2, k3 = jax.random.split(key, 3)
    inp = jax.random.normal(k1, (B, L, E), dtype=jnp.float32)
    # token ids in a realistic range (above RANK_FIRST so ranks vary)
    token_ids = jax.random.randint(k2, (B, L), 2000, 6000, dtype=jnp.int32)
    # regular-tokens mask: first/last positions are "special", tail padding
    regular = np.ones((B, L), dtype=np.uint8)
    regular[:, 0] = 0
    regular[:, -1] = 0
    regular[1, 12:] = 0
    padding = np.ones((B, L), dtype=np.uint8)
    padding[1, 12:] = 0
    masks_dict = {
        "padding_mask": padding,
        "regular_tokens_mask": regular,
        "seq_pair_mask": np.zeros((B, L), dtype=np.uint8),
    }

    indices, logp, sums = freq_chunker_forward(
        inp, masks_dict, token_ids, mask_special_tokens=True)

    # --- correctness check of the Pallas hot path against a plain reference --
    tid_np = np.asarray(token_ids).astype(np.float32)
    keep_np = (regular == 1).astype(np.float32)
    rank_ref = np.maximum(tid_np - RANK_FIRST, 1.0)
    logp_ref = -ALPHA * np.log(rank_ref) * keep_np
    sums_ref = np.cumsum(logp_ref, axis=-1)
    np.testing.assert_allclose(logp, logp_ref, rtol=1e-5, atol=1e-5)
    np.testing.assert_allclose(sums, sums_ref, rtol=1e-5, atol=1e-4)

    # extra check at a multi-block, non-aligned shape to exercise the carry
    B2, L2 = 3, 1000
    tids2 = jax.random.randint(k3, (B2, L2), 1500, 50000, dtype=jnp.int32)
    keep2 = (jax.random.uniform(k1, (B2, L2)) > 0.1).astype(jnp.uint8)
    lp2, s2 = freq_chunker_pallas(tids2, keep2)
    lp2 = np.asarray(jax.block_until_ready(lp2))
    s2 = np.asarray(jax.block_until_ready(s2))
    lp2_ref = (-ALPHA * np.log(np.maximum(np.asarray(tids2, np.float32)
                                          - RANK_FIRST, 1.0))
               * np.asarray(keep2, np.float32))
    np.testing.assert_allclose(lp2, lp2_ref, rtol=1e-5, atol=1e-5)
    np.testing.assert_allclose(s2, np.cumsum(lp2_ref, axis=-1),
                               rtol=1e-4, atol=1e-2)

    # sanity: chunks cover every position exactly once per batch element
    for b in range(B):
        covered = sorted(i for tup in indices[b] for i in tup)
        assert covered == list(range(L)), f"bad chunk cover for batch {b}"

    print("KERNEL_OK")
</pallas_src>

<mosaic_0001>
module attributes {stable_mosaic.version = 11 : i64} {
  func.func @_freq_chunker_kernel(%arg0: i32, %arg1: i32, %arg2: memref<8x128xi32, #tpu.memory_space<vmem>>, %arg3: memref<8x128xi8, #tpu.memory_space<vmem>>, %arg4: memref<128x128xf32, #tpu.memory_space<vmem>>, %arg5: memref<8x128xf32, #tpu.memory_space<vmem>>, %arg6: memref<8x128xf32, #tpu.memory_space<vmem>>, %arg7: memref<8x1xf32, #tpu.memory_space<vmem>>) attributes {dimension_semantics = [#tpu.dimension_semantics<parallel>, #tpu.dimension_semantics<arbitrary>], iteration_bounds = array<i64: 1, 1>, scalar_prefetch = 0 : i64, scratch_operands = 1 : i64, tpu.core_type = #tpu.core_type<tc>, window_params = [{transform_indices = @transform_0, window_bounds = array<i64: 8, 128>}, {transform_indices = @transform_1, window_bounds = array<i64: 8, 128>}, {pipeline_mode = #tpu.pipeline_mode<synchronous>, transform_indices = @transform_2, window_bounds = array<i64: 128, 128>}, {transform_indices = @transform_3, window_bounds = array<i64: 8, 128>}, {transform_indices = @transform_4, window_bounds = array<i64: 8, 128>}]} {
    %c0_i32 = arith.constant 0 : i32
    %0 = arith.cmpi eq, %arg1, %c0_i32 : i32
    %1 = arith.extui %0 : i1 to i32
    %c0_i32_0 = arith.constant 0 : i32
    %2 = arith.cmpi ne, %1, %c0_i32_0 : i32
    scf.if %2 {
      %cst_18 = arith.constant 0.000000e+00 : f32
      %25 = vector.broadcast %cst_18 : f32 to vector<8x1xf32>
      %c0_19 = arith.constant 0 : index
      %c0_20 = arith.constant 0 : index
      %26 = vector.load %arg7[%c0_19, %c0_20] : memref<8x1xf32, #tpu.memory_space<vmem>>, vector<8x1xf32>
      tpu.vector_store %arg7[%c0_19, %c0_20], %25 {strides = array<i32>} : memref<8x1xf32, #tpu.memory_space<vmem>>, vector<8x1xf32>,
    } else {
    }
    %c0 = arith.constant 0 : index
    %c0_1 = arith.constant 0 : index
    %3 = vector.load %arg2[%c0, %c0_1] : memref<8x128xi32, #tpu.memory_space<vmem>>, vector<8x128xi32>
    %4 = arith.sitofp %3 : vector<8x128xi32> to vector<8x128xf32>
    %c0_2 = arith.constant 0 : index
    %c0_3 = arith.constant 0 : index
    %5 = vector.load %arg3[%c0_2, %c0_3] : memref<8x128xi8, #tpu.memory_space<vmem>>, vector<8x128xi8>
    %6 = arith.sitofp %5 : vector<8x128xi8> to vector<8x128xf32>
    %cst = arith.constant 1.996000e+03 : f32
    %7 = vector.broadcast %cst : f32 to vector<8x128xf32>
    %8 = arith.subf %4, %7 : vector<8x128xf32>
    %cst_4 = arith.constant 1.000000e+00 : f32
    %9 = vector.broadcast %cst_4 : f32 to vector<8x128xf32>
    %10 = arith.maximumf %8, %9 : vector<8x128xf32>
    %cst_5 = arith.constant 0.000000e+00 : f32
    %cst_6 = arith.constant 1.000000e+00 : f32
    %11 = arith.subf %cst_5, %cst_6 : f32
    %12 = math.log %10 : vector<8x128xf32>
    %13 = vector.broadcast %11 : f32 to vector<8x128xf32>
    %14 = arith.mulf %13, %12 : vector<8x128xf32>
    %15 = arith.mulf %14, %6 : vector<8x128xf32>
    %c0_7 = arith.constant 0 : index
    %c0_8 = arith.constant 0 : index
    %16 = vector.load %arg5[%c0_7, %c0_8] : memref<8x128xf32, #tpu.memory_space<vmem>>, vector<8x128xf32>
    tpu.vector_store %arg5[%c0_7, %c0_8], %15 {strides = array<i32>} : memref<8x128xf32, #tpu.memory_space<vmem>>, vector<8x128xf32>,
    %c0_9 = arith.constant 0 : index
    %c0_10 = arith.constant 0 : index
    %17 = vector.load %arg4[%c0_9, %c0_10] : memref<128x128xf32, #tpu.memory_space<vmem>>, vector<128x128xf32>
    %cst_11 = arith.constant dense<0.000000e+00> : vector<8x128xf32>
    %18 = tpu.matmul %15, %17, %cst_11 {dimension_numbers = #tpu.dot_dimension_numbers<[1], [0], [0], [1], [0, 0, 1, 1], [], []>} : vector<8x128xf32>, vector<128x128xf32>, vector<8x128xf32> -> vector<8x128xf32>
    %c0_12 = arith.constant 0 : index
    %c0_13 = arith.constant 0 : index
    %19 = vector.load %arg7[%c0_12, %c0_13] : memref<8x1xf32, #tpu.memory_space<vmem>>, vector<8x1xf32>
    %20 = vector.broadcast %19 : vector<8x1xf32> to vector<8x128xf32>
    %21 = arith.addf %18, %20 : vector<8x128xf32>
    %c0_14 = arith.constant 0 : index
    %c0_15 = arith.constant 0 : index
    %22 = vector.load %arg6[%c0_14, %c0_15] : memref<8x128xf32, #tpu.memory_space<vmem>>, vector<8x128xf32>
    tpu.vector_store %arg6[%c0_14, %c0_15], %21 {strides = array<i32>} : memref<8x128xf32, #tpu.memory_space<vmem>>, vector<8x128xf32>,
    %23 = vector.extract_strided_slice %21 {offsets = [0, 127], sizes = [8, 1], strides = [1, 1]} : vector<8x128xf32> to vector<8x1xf32>
    %c0_16 = arith.constant 0 : index
    %c0_17 = arith.constant 0 : index
    %24 = vector.load %arg7[%c0_16, %c0_17] : memref<8x1xf32, #tpu.memory_space<vmem>>, vector<8x1xf32>
    tpu.vector_store %arg7[%c0_16, %c0_17], %23 {strides = array<i32>} : memref<8x1xf32, #tpu.memory_space<vmem>>, vector<8x1xf32>,
    return
  }
  func.func @transform_0(%arg0: i32, %arg1: i32) -> (i32, i32) {
    %c0_i32 = arith.constant 0 : i32
    return %arg0, %arg1 : i32, i32
  }
  func.func @transform_1(%arg0: i32, %arg1: i32) -> (i32, i32) {
    %c0_i32 = arith.constant 0 : i32
    return %arg0, %arg1 : i32, i32
  }
  func.func @transform_2(%arg0: i32, %arg1: i32) -> (i32, i32) {
    %c0_i32 = arith.constant 0 : i32
    %c0_i32_0 = arith.constant 0 : i32
    %c0_i32_1 = arith.constant 0 : i32
    return %c0_i32, %c0_i32_0 : i32, i32
  }
  func.func @transform_3(%arg0: i32, %arg1: i32) -> (i32, i32) {
    %c0_i32 = arith.constant 0 : i32
    return %arg0, %arg1 : i32, i32
  }
  func.func @transform_4(%arg0: i32, %arg1: i32) -> (i32, i32) {
    %c0_i32 = arith.constant 0 : i32
    return %arg0, %arg1 : i32, i32
  }
}

</mosaic_0001>

<llo_original>
// kernel: tpu_custom_call.1
$region0: #{tpu_custom_call.1}
  #allocation0 [shape = 'u32[]', space=smem, size = 0x4, offset = 0x4, fixed_abs, tag = 'smem constant byte address 0x4 - core index']
  #allocation1 [shape = 'u32[144,128]{1,0:T(1,128)}', space=vmem, size = 0x12000, scoped, tag = 'internal scratch']
  #allocation2 [shape = 'f32[8,1]{1,0:T(8,128)}', space=vmem, size = 0x1000, scoped, tag = 'scratch operand']
  %s0 = inlined_call_operand.hbm [shape: s32[8,128], index: 0, kind: input, shape index: {}]
  %s1 = inlined_call_operand.vmem [shape: s8[8,128], index: 1, kind: input, shape index: {}]
  %s2 = inlined_call_operand.hbm [shape: f32[128,128], index: 2, kind: input, shape index: {}]
  %s3 = inlined_call_operand.hbm [shape: f32[8,128], index: 3, kind: output, shape index: {0}]
  %s4 = inlined_call_operand.hbm [shape: f32[8,128], index: 4, kind: output, shape index: {1}]
  %5 = xla_tuple %s3, %s4
  %s6 = sld [smem:[#allocation0]]
  $region42: #{tpu_custom_call.1} parent=0
    _
  %s8 = ssub.s32 1, %s6
  %s9 = scalar_select 0, %s8, %s6
  $region1: #{tpu_custom_call.1} parent=0
    #allocation3 [shape = 'u8[4096]{0}', space=vmem, size = 0x1000, scoped, tag = 'input window, operand 0, single buffered']
    #allocation4 [shape = 's32[1]{0}', space=sflag, size = 0x4, scoped, tag = 'scoped memory for tpu_custom_call.1']
    #allocation5 [shape = 's32[1]{0}', space=sflag, size = 0x4, scoped, tag = 'scoped memory for tpu_custom_call.1']
    #allocation6 [shape = 'u8[65536]{0}', space=vmem, size = 0x10000, scoped, tag = 'input window, operand 2, single buffered']
    #allocation7 [shape = 's32[1]{0}', space=sflag, size = 0x4, scoped, tag = 'scoped memory for tpu_custom_call.1']
    #allocation8 [shape = 'u8[4096]{0}', space=vmem, size = 0x1000, scoped, tag = 'output window, operand 0, single buffered']
    #allocation9 [shape = 'u8[4096]{0}', space=vmem, size = 0x1000, scoped, tag = 'output window, operand 1, single buffered']
    #allocation10 [shape = 's32[1]{0}', space=sflag, size = 0x4, scoped, tag = 'scoped memory for tpu_custom_call.1']
    %10 = vsyncpa [#allocation4], 0
    %11 = vsyncpa [#allocation7], 0
    %12 = vsyncpa [#allocation5], 0
    %13 = vsyncpa [#allocation10], 0
    // Predicated region
    $region2: #{tpu_custom_call.1} parent=1 // pred_check
      _
    $region3: #{tpu_custom_call.1} parent=1 // pred_check_branch
      %15 = sbr.rel (0) target = $region5
    $region4: #{tpu_custom_call.1} parent=1 // pred_region
      %s17 = ssub.s32 128, 128
      %18 = vsyncadd [#allocation4], %s17
      %s20 = sshll.u32 [#allocation3], 4
      %s21 = int_to_ptr.vmem [resolvable:$true] %s20
      %23 = dma.hbm_to_vmem [thread:$0]  %s0, 128, %s21, [#allocation4]
    $region5: #{tpu_custom_call.1} parent=1 // pred_fallthru
      _
    // Predicated region
    $region6: #{tpu_custom_call.1} parent=1 // pred_check
      _
    $region7: #{tpu_custom_call.1} parent=1 // pred_check_branch
      %25 = sbr.rel (0) target = $region9
    $region8: #{tpu_custom_call.1} parent=1 // pred_region
      _
    $region9: #{tpu_custom_call.1} parent=1 // pred_fallthru
      _
    // Predicated region
    $region10: #{tpu_custom_call.1} parent=1 // pred_check
      _
    $region11: #{tpu_custom_call.1} parent=1 // pred_check_branch
      %27 = sbr.rel (0) target = $region13
    $region12: #{tpu_custom_call.1} parent=1 // pred_region
      %s29 = ssub.s32 2048, 2048
      %30 = vsyncadd [#allocation7], %s29
      %s31 = sshll.u32 [#allocation6], 4
      %s32 = int_to_ptr.vmem [resolvable:$true] %s31
      %37 = dma.hbm_to_vmem [thread:$0]  %s2, 2048, %s32, [#allocation7], 128, 128, 8
    $region13: #{tpu_custom_call.1} parent=1 // pred_fallthru
      _
    // Predicated region
    $region14: #{tpu_custom_call.1} parent=1 // pred_check
      _
    $region15: #{tpu_custom_call.1} parent=1 // pred_check_branch
      %39 = sbr.rel (0) target = $region17
    $region16: #{tpu_custom_call.1} parent=1 // pred_region
      %40 = dma.done [#allocation4], 128
    $region17: #{tpu_custom_call.1} parent=1 // pred_fallthru
      _
    // Predicated region
    $region18: #{tpu_custom_call.1} parent=1 // pred_check
      _
    $region19: #{tpu_custom_call.1} parent=1 // pred_check_branch
      %42 = sbr.rel (0) target = $region21
    $region20: #{tpu_custom_call.1} parent=1 // pred_region
      %43 = dma.done [#allocation7], 2048
    $region21: #{tpu_custom_call.1} parent=1 // pred_fallthru
      _
    %p44 = scmp.eq.s32.totalorder 0, 0
    // Predicated region
    $region22: #{tpu_custom_call.1} parent=1 // pred_check
      %p45 = pneg %p44
    $region23: #{tpu_custom_call.1} parent=1 // pred_check_branch
      %47 = sbr.rel (%p45) target = $region25
    $region24: #{tpu_custom_call.1} parent=1 // pred_region
      %vm48 = vcmask 7168
      %49 = vst.msk [vmem:[#allocation2] sm:$0xff] %vm48, 0.0
    $region25: #{tpu_custom_call.1} parent=1 // pred_fallthru
      _
    %v50 = vld [vmem:[#allocation3] sm:$0xff]
    %v51 = vcvt.s32.f32 %v50
    %v52 = vld [vmem:[%s1] sm:$0x3]
    %v53 = vunpack.c.0.s8 %v52
    %v54 = vcvt.s32.f32 %v53
    %v55 = vsub.f32 %v51, 1996.0
    %v56 = vmax.f32 %v55, 1.0
    %v57 = vlog2.pop %v56
    %v58 = vmul.f32 %v57, 0.6931472
    %v59 = vmul.f32 %v58, -1.0
    %v60 = vmul.f32 %v59, %v54
    %61 = vst [vmem:[#allocation8] sm:$0xff] %v60
    %v62 = vld [vmem:[#allocation6] sm:$0xff]
    %v63 = vld [vmem:[#allocation6 + $0x8] sm:$0xff]
    %v64 = vld [vmem:[#allocation6 + $0x10] sm:$0xff]
    %v65 = vld [vmem:[#allocation6 + $0x18] sm:$0xff]
    %v66 = vld [vmem:[#allocation6 + $0x20] sm:$0xff]
    %v67 = vld [vmem:[#allocation6 + $0x28] sm:$0xff]
    %v68 = vld [vmem:[#allocation6 + $0x30] sm:$0xff]
    %v69 = vld [vmem:[#allocation6 + $0x38] sm:$0xff]
    %v70 = vld [vmem:[#allocation6 + $0x40] sm:$0xff]
    %v71 = vld [vmem:[#allocation6 + $0x48] sm:$0xff]
    %v72 = vld [vmem:[#allocation6 + $0x50] sm:$0xff]
    %v73 = vld [vmem:[#allocation6 + $0x58] sm:$0xff]
    %v74 = vld [vmem:[#allocation6 + $0x60] sm:$0xff]
    %v75 = vld [vmem:[#allocation6 + $0x68] sm:$0xff]
    %v76 = vld [vmem:[#allocation6 + $0x70] sm:$0xff]
    %v77 = vld [vmem:[#allocation6 + $0x78] sm:$0xff]
    %v78 = vld [vmem:[#allocation2] sm:$0xff]
    %80 = vset.pattern.permute.xlu0 0
    %81 = vperm.xlu0 %80, %v78
    %v82 = vpop.permute.xlu0 %81
    %84 = vmatprep.subr.mxu0 0.0
    %85 = vmatpush1.msra.mxu0 %v62
    %86 = vmatprep.subr.mxu0 0.0
    %87 = vmatpush1.msra.mxu0 %v63
    %88 = vmatprep.subr.mxu0 0.0
    %89 = vmatpush1.msra.mxu0 %v64
    %90 = vmatprep.subr.mxu0 0.0
    %91 = vmatpush1.msra.mxu0 %v65
    %92 = vmatprep.subr.mxu0 0.0
    %93 = vmatpush1.msra.mxu0 %v66
    %94 = vmatprep.subr.mxu0 0.0
    %95 = vmatpush1.msra.mxu0 %v67
    %96 = vmatprep.subr.mxu0 0.0
    %97 = vmatpush1.msra.mxu0 %v68
    %98 = vmatprep.subr.mxu0 0.0
    %99 = vmatpush1.msra.mxu0 %v69
    %100 = vmatprep.subr.mxu0 0.0
    %101 = vmatpush1.msra.mxu0 %v70
    %102 = vmatprep.subr.mxu0 0.0
    %103 = vmatpush1.msra.mxu0 %v71
    %104 = vmatprep.subr.mxu0 0.0
    %105 = vmatpush1.msra.mxu0 %v72
    %106 = vmatprep.subr.mxu0 0.0
    %107 = vmatpush1.msra.mxu0 %v73
    %108 = vmatprep.subr.mxu0 0.0
    %109 = vmatpush1.msra.mxu0 %v74
    %110 = vmatprep.subr.mxu0 0.0
    %111 = vmatpush1.msra.mxu0 %v75
    %112 = vmatprep.subr.mxu0 0.0
    %113 = vmatpush1.msra.mxu0 %v76
    %114 = vmatprep.subr.mxu0 0.0
    %115 = vmatpush1.msra.mxu0 %v77
    %116 = vmatprep.subr.mxu0 0.0
    %117 = vmatpush1.msra.mxu0 0.0
    %118 = vmatprep.subr.mxu0 0.0
    %119 = vmatpush1.msra.mxu0 0.0
    %120 = vmatprep.subr.mxu0 0.0
    %121 = vmatpush1.msra.mxu0 0.0
    %122 = vmatprep.subr.mxu0 0.0
    %123 = vmatpush1.msra.mxu0 0.0
    %124 = vmatprep.subr.mxu0 0.0
    %125 = vmatpush1.msra.mxu0 0.0
    %126 = vmatprep.subr.mxu0 0.0
    %127 = vmatpush1.msra.mxu0 0.0
    %128 = vmatprep.subr.mxu0 0.0
    %129 = vmatpush1.msra.mxu0 0.0
    %130 = vmatprep.subr.mxu0 0.0
    %131 = vmatpush1.msra.mxu0 0.0
    %132 = vmatprep.subr.mxu0 0.0
    %133 = vmatpush1.msra.mxu0 0.0
    %134 = vmatprep.subr.mxu0 0.0
    %135 = vmatpush1.msra.mxu0 0.0
    %136 = vmatprep.subr.mxu0 0.0
    %137 = vmatpush1.msra.mxu0 0.0
    %138 = vmatprep.subr.mxu0 0.0
    %139 = vmatpush1.msra.mxu0 0.0
    %140 = vmatprep.subr.mxu0 0.0
    %141 = vmatpush1.msra.mxu0 0.0
    %142 = vmatprep.subr.mxu0 0.0
    %143 = vmatpush1.msra.mxu0 0.0
    %144 = vmatprep.subr.mxu0 0.0
    %145 = vmatpush1.msra.mxu0 0.0
    %146 = vmatprep.subr.mxu0 0.0
    %147 = vmatpush1.msra.mxu0 0.0
    %148 = vmatprep.mubr.f32.mxu0 0.0
    %149 = vmatmul.mubr.f32.gmra.mrb[0].mxu0 %v60
    %v150 = vpop.f32.mrb[0].mxu0
    %v151 = vadd.f32 %v82, %v150
    %v152 = vpop.f32.mrb[0].mxu0
    %153 = vdwg.mxu0
    %154 = vst [vmem:[#allocation9] sm:$0xff] %v151
    %156 = vrot.lane.b32.xlu0 %v151, 1
    %v157 = vpop.permute.xlu0 %156
    %vm159 = vcmask 7168
    %160 = vst.msk [vmem:[#allocation2] sm:$0xff] %vm159, %v157
    // Predicated region
    $region26: #{tpu_custom_call.1} parent=1 // pred_check
      _
    $region27: #{tpu_custom_call.1} parent=1 // pred_check_branch
      %162 = sbr.rel (0) target = $region29
    $region28: #{tpu_custom_call.1} parent=1 // pred_region
      %s164 = ssub.s32 128, 128
      %165 = vsyncadd [#allocation5], %s164
      %s167 = sshll.u32 [#allocation8], 4
      %s168 = int_to_ptr.vmem [resolvable:$true] %s167
      %170 = dma.vmem_to_hbm [thread:$0]  %s168, 128, %s3, [#allocation5]
    $region29: #{tpu_custom_call.1} parent=1 // pred_fallthru
      _
    // Predicated region
    $region30: #{tpu_custom_call.1} parent=1 // pred_check
      _
    $region31: #{tpu_custom_call.1} parent=1 // pred_check_branch
      %172 = sbr.rel (0) target = $region33
    $region32: #{tpu_custom_call.1} parent=1 // pred_region
      %s174 = ssub.s32 128, 128
      %175 = vsyncadd [#allocation10], %s174
      %s177 = sshll.u32 [#allocation9], 4
      %s178 = int_to_ptr.vmem [resolvable:$true] %s177
      %180 = dma.vmem_to_hbm [thread:$0]  %s178, 128, %s4, [#allocation10]
    $region33: #{tpu_custom_call.1} parent=1 // pred_fallthru
      _
    // Predicated region
    $region34: #{tpu_custom_call.1} parent=1 // pred_check
      _
    $region35: #{tpu_custom_call.1} parent=1 // pred_check_branch
      %182 = sbr.rel (0) target = $region37
    $region36: #{tpu_custom_call.1} parent=1 // pred_region
      %183 = dma.done [#allocation5], 128
    $region37: #{tpu_custom_call.1} parent=1 // pred_fallthru
      _
    // Predicated region
    $region38: #{tpu_custom_call.1} parent=1 // pred_check
      _
    $region39: #{tpu_custom_call.1} parent=1 // pred_check_branch
      %185 = sbr.rel (0) target = $region41
    $region40: #{tpu_custom_call.1} parent=1 // pred_region
      %186 = dma.done [#allocation10], 128
    $region41: #{tpu_custom_call.1} parent=1 // pred_fallthru
      _
    %187 = vsyncpa [#allocation4], 1
    %188 = vsyncpa [#allocation7], 1
    %189 = vsyncpa [#allocation5], 1
    %190 = vsyncpa [#allocation10], 1

</llo_original>
